<compile_context>
chip_gen: v6e
topology: v6e:2x2x1
jax: 0.10.0
libtpu: 0.0.40
codegen_flags: <defaults>
</compile_context>

<pallas_src>
import jax
import jax.numpy as jnp
from jax.experimental import pallas as pl
from jax.experimental.pallas import tpu as pltpu


LANES = 128      # TPU lane width; all packed slabs are padded to 128 lanes
SRC_TILE = 128   # source-node chunk width for the running-max aggregation


# ----------------------------- fused Pallas kernel ------------------------- #

def _make_gnn_kernel(n_layers, n_feat, n_hid, blk):
    """Fused kernel: n_layers x (SAGEConv-pool + LayerNorm + ReLU) + max readout + affine head."""

    def kernel(adj_ref, x_ref, w_ref, v_ref, o_ref):
        adj = adj_ref[...]                                     # [N, N]; adj[dst, src]
        mask = adj > 0.5                                       # hoisted once, shared by all layers
        has_nbr = jnp.sum(adj, axis=1, keepdims=True) > 0.0    # [N, 1] zero-in-degree guard
        vecs = v_ref[...]                                      # [rows, 128] packed bias/LN vectors
        x = x_ref[...]                                         # [N, F]
        n_nodes = x.shape[0]

        fin = n_feat
        for l in range(n_layers):
            # packed weight blocks (static row offsets, multiples of `blk` which is 8-aligned)
            w_cat = w_ref[2 * l * blk: 2 * l * blk + fin, :]                    # [fin, 128]
            w_ngh = w_ref[(2 * l + 1) * blk: (2 * l + 1) * blk + fin, :n_hid]   # [fin, H]
            b_pool = vecs[4 * l + 0: 4 * l + 1, :fin]                           # [1, fin]
            bias   = vecs[4 * l + 1: 4 * l + 2, :n_hid]                         # [1, H]
            gamma  = vecs[4 * l + 2: 4 * l + 3, :n_hid]                         # [1, H]
            beta   = vecs[4 * l + 3: 4 * l + 4, :n_hid]                         # [1, H]

            # ONE MXU dot for fc_pool + fc_self (shared LHS x):
            #   cols [0:fin]      -> x @ W_pool
            #   cols [fin:fin+H]  -> x @ W_self
            cat = jnp.dot(x, w_cat, preferred_element_type=jnp.float32)         # [N, 128]
            pooled = jnp.maximum(cat[:, :fin] + b_pool, 0.0)                    # [N, fin]
            h_self = cat[:, fin:fin + n_hid]                                    # [N, H]

            # masked max over in-neighbours, lane-dense: the source-node axis sits on the
            # 128-lane axis (pooled transposed once per layer), reduced with a lane-axis max
            # per SRC_TILE chunk as a running max (worst-case temp is [N, fin, SRC_TILE]).
            pooled_t = pooled.T                                                 # [fin, N]
            neigh = None
            for s0 in range(0, n_nodes, SRC_TILE):
                s1 = min(s0 + SRC_TILE, n_nodes)
                cand = jnp.where(mask[:, None, s0:s1],
                                 pooled_t[None, :, s0:s1], -1e30)               # [N, fin, S]
                cmax = jnp.max(cand, axis=-1)                                   # [N, fin]
                neigh = cmax if neigh is None else jnp.maximum(neigh, cmax)
            # zero-in-degree nodes: zero-fill instead of the -1e30 sentinel
            # (DGL raises on such graphs by default; unused for the ring test graph).
            neigh = jnp.where(has_nbr, neigh, 0.0)

            # fc_self(x) + fc_neigh(neigh) + conv bias
            h = h_self + jnp.dot(neigh, w_ngh, preferred_element_type=jnp.float32) + bias

            # LayerNorm (two-pass variance, eps=1e-5, elementwise affine), then ReLU;
            # Dropout(p=0) is the identity.
            mean = jnp.mean(h, axis=-1, keepdims=True)
            c = h - mean
            var = jnp.mean(c * c, axis=-1, keepdims=True)
            x = jnp.maximum(c * jax.lax.rsqrt(var + 1e-5) * gamma + beta, 0.0)
            fin = n_hid

        # Graph max-pool readout + collapsed (fc1 o fc) affine, written to a lane-dense
        # (1, 128) slab; the host slices column 0 (padding columns are all-zero by construction).
        w_out = w_ref[2 * n_layers * blk: 2 * n_layers * blk + n_hid, :]        # [H, 128]
        b_out = vecs[4 * n_layers: 4 * n_layers + 1, :]                         # [1, 128]
        g = jnp.max(x, axis=0, keepdims=True)                                   # [1, H]
        o_ref[...] = jnp.dot(g, w_out, preferred_element_type=jnp.float32) + b_out

    return kernel


# ------------------------------ host wrapper ------------------------------- #

def _pack_slabs(params, n_feat, n_hid):
    """Pack all per-layer parameters into one weight slab and one vector slab.

    Weight slab rows (block stride `blk`, 8-aligned):
      block 2l   : [W_pool | W_self] of layer l   ([fin, fin+H], zero-padded to [blk, 128])
      block 2l+1 : W_neigh of layer l             ([fin, H])
      last block : W_out = W_fc1 @ W_fc           ([H, 1], lanes 1..127 zero)
    Vector slab rows: per layer (b_pool, bias, gamma, beta), then b_out = b_fc1 @ W_fc + b_fc.
    """
    layers = params["layers"]
    n_layers = len(layers)
    blk = -(-max(n_feat, n_hid) // 8) * 8

    w_slab = jnp.zeros(((2 * n_layers + 1) * blk, LANES), jnp.float32)
    n_vrows = -(-(4 * n_layers + 1) // 8) * 8
    v_slab = jnp.zeros((n_vrows, LANES), jnp.float32)

    fin = n_feat
    for l, layer in enumerate(layers):
        w_cat = jnp.concatenate([layer["w_pool"], layer["w_self"]], axis=1)   # [fin, fin+H]
        r = 2 * l * blk
        w_slab = w_slab.at[r:r + fin, :fin + n_hid].set(w_cat)
        r = (2 * l + 1) * blk
        w_slab = w_slab.at[r:r + fin, :n_hid].set(layer["w_neigh"])
        v_slab = v_slab.at[4 * l + 0, :fin].set(layer["b_pool"][0])
        v_slab = v_slab.at[4 * l + 1, :n_hid].set(layer["bias"][0])
        v_slab = v_slab.at[4 * l + 2, :n_hid].set(layer["gamma"][0])
        v_slab = v_slab.at[4 * l + 3, :n_hid].set(layer["beta"][0])
        fin = n_hid

    # fc1 followed by fc with no nonlinearity in between -> collapse:
    #   out = (g @ W1 + b1) @ W2 + b2 = g @ (W1 @ W2) + (b1 @ W2 + b2)
    w_out = params["w_fc1"] @ params["w_fc"]                      # [H, 1]
    b_out = params["b_fc1"] @ params["w_fc"] + params["b_fc"]     # [1, 1]
    r = 2 * n_layers * blk
    w_slab = w_slab.at[r:r + n_hid, :1].set(w_out)
    v_slab = v_slab.at[4 * n_layers, :1].set(b_out[0])
    return w_slab, v_slab, blk


def gnn_forward(adj, features, params):
    n_layers = len(params["layers"])
    n_feat = features.shape[1]
    n_hid = params["layers"][0]["w_self"].shape[1]

    # TODO(synk): in a real deployment the slabs would be packed once outside the per-call path.
    w_slab, v_slab, blk = _pack_slabs(params, n_feat, n_hid)

    out = pl.pallas_call(
        _make_gnn_kernel(n_layers, n_feat, n_hid, blk),
        out_shape=jax.ShapeDtypeStruct((1, LANES), jnp.float32),
        in_specs=[pl.BlockSpec(memory_space=pltpu.MemorySpace.VMEM)] * 4,
        out_specs=pl.BlockSpec(memory_space=pltpu.MemorySpace.VMEM),
    )(adj, features, w_slab, v_slab)
    return out[:, :1]


# ------------------------------ pure-JAX ref ------------------------------- #

def gnn_forward_ref(adj, features, params):
    x = features
    has_nbr = adj.sum(axis=1, keepdims=True) > 0.0
    for layer in params["layers"]:
        pooled = jnp.maximum(x @ layer["w_pool"] + layer["b_pool"], 0.0)
        masked = jnp.where((adj > 0.5)[:, :, None], pooled[None, :, :], -1e30)
        neigh = jnp.where(has_nbr, jnp.max(masked, axis=1), 0.0)
        h = x @ layer["w_self"] + neigh @ layer["w_neigh"] + layer["bias"]
        mean = jnp.mean(h, axis=-1, keepdims=True)
        var = jnp.mean((h - mean) ** 2, axis=-1, keepdims=True)
        h = (h - mean) * jax.lax.rsqrt(var + 1e-5) * layer["gamma"] + layer["beta"]
        x = jnp.maximum(h, 0.0)
    g = jnp.max(x, axis=0, keepdims=True)
    y = g @ params["w_fc1"] + params["b_fc1"]
    return y @ params["w_fc"] + params["b_fc"]


# --------------------------------- main ------------------------------------ #

if __name__ == "__main__":
    N_NODES, N_FEAT, N_HID, N_LAYERS = 8, 16, 32, 2

    key = jax.random.PRNGKey(0)

    # deterministic parameter init (shapes follow GNN.__init__ with num_features=16, num_hidden=32)
    def nrm(k, shape, scale=0.1):
        return scale * jax.random.normal(k, shape, dtype=jnp.float32)

    layers = []
    fin = N_FEAT
    for _ in range(N_LAYERS):
        key, k1, k2, k3, k4, k5 = jax.random.split(key, 6)
        layers.append({
            "w_pool":  nrm(k1, (fin, fin)),          # fc_pool.weight.T
            "b_pool":  nrm(k2, (1, fin)),            # fc_pool.bias
            "w_self":  nrm(k3, (fin, N_HID)),        # fc_self.weight.T (no bias)
            "w_neigh": nrm(k4, (fin, N_HID)),        # fc_neigh.weight.T (no bias)
            "bias":    nrm(k5, (1, N_HID)),          # SAGEConv bias
            "gamma":   jnp.ones((1, N_HID), jnp.float32),   # LayerNorm weight
            "beta":    jnp.zeros((1, N_HID), jnp.float32),  # LayerNorm bias
        })
        fin = N_HID

    key, kf1, kf1b, kf2, kf2b, kx = jax.random.split(key, 6)
    params = {
        "layers": layers,
        "w_fc1": nrm(kf1, (N_HID, N_HID)),
        "b_fc1": nrm(kf1b, (1, N_HID)),
        "w_fc":  nrm(kf2, (N_HID, 1)),
        "b_fc":  nrm(kf2b, (1, 1)),
    }

    # node features [N, F]
    features = jax.random.normal(kx, (N_NODES, N_FEAT), dtype=jnp.float32)

    # deterministic ring-style graph: every node has in-degree 2 (edges (i+1)->i and (i+2)->i)
    adj = jnp.zeros((N_NODES, N_NODES), dtype=jnp.float32)
    for i in range(N_NODES):
        adj = adj.at[i, (i + 1) % N_NODES].set(1.0)
        adj = adj.at[i, (i + 2) % N_NODES].set(1.0)

    out = jax.jit(gnn_forward)(adj, features, params)
    out = jax.block_until_ready(out)

    ref = gnn_forward_ref(adj, features, params)
    assert out.shape == (1, 1)
    assert jnp.allclose(out, ref, atol=1e-4, rtol=1e-4), (out, ref)

    print("KERNEL_OK")
</pallas_src>

<mosaic_0001>
module attributes {stable_mosaic.version = 11 : i64} {
  func.func @kernel(%arg0: memref<8x8xf32, #tpu.memory_space<vmem>>, %arg1: memref<8x16xf32, #tpu.memory_space<vmem>>, %arg2: memref<160x128xf32, #tpu.memory_space<vmem>>, %arg3: memref<16x128xf32, #tpu.memory_space<vmem>>, %arg4: memref<1x128xf32, #tpu.memory_space<vmem>>) attributes {dimension_semantics = [], scalar_prefetch = 0 : i64, scratch_operands = 0 : i64, tpu.core_type = #tpu.core_type<tc>} {
    %c0 = arith.constant 0 : index
    %c0_0 = arith.constant 0 : index
    %0 = vector.load %arg0[%c0, %c0_0] : memref<8x8xf32, #tpu.memory_space<vmem>>, vector<8x8xf32>
    %cst = arith.constant 5.000000e-01 : f32
    %1 = vector.broadcast %cst : f32 to vector<8x8xf32>
    %2 = arith.cmpf ogt, %0, %1 : vector<8x8xf32>
    %cst_1 = arith.constant dense<0.000000e+00> : vector<8xf32>
    %3 = vector.multi_reduction <add>, %0, %cst_1 [1] : vector<8x8xf32> to vector<8xf32>
    %4 = vector.shape_cast %3 : vector<8xf32> to vector<8x1xf32>
    %cst_2 = arith.constant 0.000000e+00 : f32
    %5 = vector.broadcast %cst_2 : f32 to vector<8x1xf32>
    %6 = arith.cmpf ogt, %4, %5 : vector<8x1xf32>
    %c0_3 = arith.constant 0 : index
    %c0_4 = arith.constant 0 : index
    %7 = vector.load %arg3[%c0_3, %c0_4] : memref<16x128xf32, #tpu.memory_space<vmem>>, vector<16x128xf32>
    %c0_5 = arith.constant 0 : index
    %c0_6 = arith.constant 0 : index
    %8 = vector.load %arg1[%c0_5, %c0_6] : memref<8x16xf32, #tpu.memory_space<vmem>>, vector<8x16xf32>
    %c0_7 = arith.constant 0 : index
    %c0_8 = arith.constant 0 : index
    %9 = vector.load %arg2[%c0_7, %c0_8] : memref<160x128xf32, #tpu.memory_space<vmem>>, vector<16x128xf32>
    %c32 = arith.constant 32 : index
    %c0_9 = arith.constant 0 : index
    %10 = vector.load %arg2[%c32, %c0_9] : memref<160x128xf32, #tpu.memory_space<vmem>>, vector<16x32xf32>
    %11 = vector.extract_strided_slice %7 {offsets = [0, 0], sizes = [1, 16], strides = [1, 1]} : vector<16x128xf32> to vector<1x16xf32>
    %12 = vector.extract_strided_slice %7 {offsets = [1, 0], sizes = [1, 32], strides = [1, 1]} : vector<16x128xf32> to vector<1x32xf32>
    %13 = vector.extract_strided_slice %7 {offsets = [2, 0], sizes = [1, 32], strides = [1, 1]} : vector<16x128xf32> to vector<1x32xf32>
    %14 = vector.extract_strided_slice %7 {offsets = [3, 0], sizes = [1, 32], strides = [1, 1]} : vector<16x128xf32> to vector<1x32xf32>
    %cst_10 = arith.constant dense<0.000000e+00> : vector<8x128xf32>
    %15 = tpu.matmul %8, %9, %cst_10 {dimension_numbers = #tpu.dot_dimension_numbers<[1], [0], [0], [1], [0, 0, 1, 1], [], []>} : vector<8x16xf32>, vector<16x128xf32>, vector<8x128xf32> -> vector<8x128xf32>
    %16 = vector.extract_strided_slice %15 {offsets = [0, 0], sizes = [8, 16], strides = [1, 1]} : vector<8x128xf32> to vector<8x16xf32>
    %17 = vector.broadcast %11 : vector<1x16xf32> to vector<8x16xf32>
    %18 = arith.addf %16, %17 : vector<8x16xf32>
    %cst_11 = arith.constant 0.000000e+00 : f32
    %19 = vector.broadcast %cst_11 : f32 to vector<8x16xf32>
    %20 = arith.maximumf %18, %19 : vector<8x16xf32>
    %21 = vector.extract_strided_slice %15 {offsets = [0, 16], sizes = [8, 32], strides = [1, 1]} : vector<8x128xf32> to vector<8x32xf32>
    %22 = tpu.transpose %20, [1, 0] : vector<8x16xf32> -> vector<16x8xf32>
    %23 = vector.shape_cast %2 : vector<8x8xi1> to vector<8x1x8xi1>
    %24 = vector.shape_cast %22 : vector<16x8xf32> to vector<1x16x8xf32>
    %cst_12 = arith.constant -1.000000e+30 : f32
    %25 = vector.shape_cast %23 : vector<8x1x8xi1> to vector<8x1x8xi1>
    %26 = vector.broadcast %25 : vector<8x1x8xi1> to vector<8x16x8xi1>
    %27 = vector.shape_cast %24 : vector<1x16x8xf32> to vector<1x16x8xf32>
    %28 = vector.broadcast %27 : vector<1x16x8xf32> to vector<8x16x8xf32>
    %29 = vector.broadcast %cst_12 : f32 to vector<8x16x8xf32>
    %30 = arith.select %26, %28, %29 : vector<8x16x8xi1>, vector<8x16x8xf32>
    %cst_13 = arith.constant dense<0xFF800000> : vector<8x16xf32>
    %31 = vector.multi_reduction <maximumf>, %30, %cst_13 [2] : vector<8x16x8xf32> to vector<8x16xf32>
    %cst_14 = arith.constant 0.000000e+00 : f32
    %32 = vector.shape_cast %6 : vector<8x1xi1> to vector<8x1xi1>
    %33 = vector.broadcast %32 : vector<8x1xi1> to vector<8x16xi1>
    %34 = vector.broadcast %cst_14 : f32 to vector<8x16xf32>
    %35 = arith.select %33, %31, %34 : vector<8x16xi1>, vector<8x16xf32>
    %cst_15 = arith.constant dense<0.000000e+00> : vector<8x32xf32>
    %36 = tpu.matmul %35, %10, %cst_15 {dimension_numbers = #tpu.dot_dimension_numbers<[1], [0], [0], [1], [0, 0, 1, 1], [], []>} : vector<8x16xf32>, vector<16x32xf32>, vector<8x32xf32> -> vector<8x32xf32>
    %37 = arith.addf %21, %36 : vector<8x32xf32>
    %38 = vector.broadcast %12 : vector<1x32xf32> to vector<8x32xf32>
    %39 = arith.addf %37, %38 : vector<8x32xf32>
    %cst_16 = arith.constant dense<0.000000e+00> : vector<8xf32>
    %40 = vector.multi_reduction <add>, %39, %cst_16 [1] : vector<8x32xf32> to vector<8xf32>
    %41 = vector.shape_cast %40 : vector<8xf32> to vector<8x1xf32>
    %cst_17 = arith.constant 3.200000e+01 : f32
    %42 = vector.broadcast %cst_17 : f32 to vector<8x1xf32>
    %43 = arith.divf %41, %42 : vector<8x1xf32>
    %44 = vector.broadcast %43 : vector<8x1xf32> to vector<8x32xf32>
    %45 = arith.subf %39, %44 : vector<8x32xf32>
    %46 = arith.mulf %45, %45 : vector<8x32xf32>
    %cst_18 = arith.constant dense<0.000000e+00> : vector<8xf32>
    %47 = vector.multi_reduction <add>, %46, %cst_18 [1] : vector<8x32xf32> to vector<8xf32>
    %48 = vector.shape_cast %47 : vector<8xf32> to vector<8x1xf32>
    %cst_19 = arith.constant 3.200000e+01 : f32
    %49 = vector.broadcast %cst_19 : f32 to vector<8x1xf32>
    %50 = arith.divf %48, %49 : vector<8x1xf32>
    %cst_20 = arith.constant 9.99999974E-6 : f32
    %51 = vector.broadcast %cst_20 : f32 to vector<8x1xf32>
    %52 = arith.addf %50, %51 : vector<8x1xf32>
    %53 = math.rsqrt %52 : vector<8x1xf32>
    %54 = vector.broadcast %53 : vector<8x1xf32> to vector<8x32xf32>
    %55 = arith.mulf %45, %54 : vector<8x32xf32>
    %56 = vector.broadcast %13 : vector<1x32xf32> to vector<8x32xf32>
    %57 = arith.mulf %55, %56 : vector<8x32xf32>
    %58 = vector.broadcast %14 : vector<1x32xf32> to vector<8x32xf32>
    %59 = arith.addf %57, %58 : vector<8x32xf32>
    %cst_21 = arith.constant 0.000000e+00 : f32
    %60 = vector.broadcast %cst_21 : f32 to vector<8x32xf32>
    %61 = arith.maximumf %59, %60 : vector<8x32xf32>
    %c64 = arith.constant 64 : index
    %c0_22 = arith.constant 0 : index
    %62 = vector.load %arg2[%c64, %c0_22] : memref<160x128xf32, #tpu.memory_space<vmem>>, vector<32x128xf32>
    %c96 = arith.constant 96 : index
    %c0_23 = arith.constant 0 : index
    %63 = vector.load %arg2[%c96, %c0_23] : memref<160x128xf32, #tpu.memory_space<vmem>>, vector<32x32xf32>
    %64 = vector.extract_strided_slice %7 {offsets = [4, 0], sizes = [1, 32], strides = [1, 1]} : vector<16x128xf32> to vector<1x32xf32>
    %65 = vector.extract_strided_slice %7 {offsets = [5, 0], sizes = [1, 32], strides = [1, 1]} : vector<16x128xf32> to vector<1x32xf32>
    %66 = vector.extract_strided_slice %7 {offsets = [6, 0], sizes = [1, 32], strides = [1, 1]} : vector<16x128xf32> to vector<1x32xf32>
    %67 = vector.extract_strided_slice %7 {offsets = [7, 0], sizes = [1, 32], strides = [1, 1]} : vector<16x128xf32> to vector<1x32xf32>
    %cst_24 = arith.constant dense<0.000000e+00> : vector<8x128xf32>
    %68 = tpu.matmul %61, %62, %cst_24 {dimension_numbers = #tpu.dot_dimension_numbers<[1], [0], [0], [1], [0, 0, 1, 1], [], []>} : vector<8x32xf32>, vector<32x128xf32>, vector<8x128xf32> -> vector<8x128xf32>
    %69 = vector.extract_strided_slice %68 {offsets = [0, 0], sizes = [8, 32], strides = [1, 1]} : vector<8x128xf32> to vector<8x32xf32>
    %70 = vector.broadcast %64 : vector<1x32xf32> to vector<8x32xf32>
    %71 = arith.addf %69, %70 : vector<8x32xf32>
    %cst_25 = arith.constant 0.000000e+00 : f32
    %72 = vector.broadcast %cst_25 : f32 to vector<8x32xf32>
    %73 = arith.maximumf %71, %72 : vector<8x32xf32>
    %74 = vector.extract_strided_slice %68 {offsets = [0, 32], sizes = [8, 32], strides = [1, 1]} : vector<8x128xf32> to vector<8x32xf32>
    %75 = tpu.transpose %73, [1, 0] : vector<8x32xf32> -> vector<32x8xf32>
    %76 = vector.shape_cast %2 : vector<8x8xi1> to vector<8x1x8xi1>
    %77 = vector.shape_cast %75 : vector<32x8xf32> to vector<1x32x8xf32>
    %cst_26 = arith.constant -1.000000e+30 : f32
    %78 = vector.shape_cast %76 : vector<8x1x8xi1> to vector<8x1x8xi1>
    %79 = vector.broadcast %78 : vector<8x1x8xi1> to vector<8x32x8xi1>
    %80 = vector.shape_cast %77 : vector<1x32x8xf32> to vector<1x32x8xf32>
    %81 = vector.broadcast %80 : vector<1x32x8xf32> to vector<8x32x8xf32>
    %82 = vector.broadcast %cst_26 : f32 to vector<8x32x8xf32>
    %83 = arith.select %79, %81, %82 : vector<8x32x8xi1>, vector<8x32x8xf32>
    %cst_27 = arith.constant dense<0xFF800000> : vector<8x32xf32>
    %84 = vector.multi_reduction <maximumf>, %83, %cst_27 [2] : vector<8x32x8xf32> to vector<8x32xf32>
    %cst_28 = arith.constant 0.000000e+00 : f32
    %85 = vector.shape_cast %6 : vector<8x1xi1> to vector<8x1xi1>
    %86 = vector.broadcast %85 : vector<8x1xi1> to vector<8x32xi1>
    %87 = vector.broadcast %cst_28 : f32 to vector<8x32xf32>
    %88 = arith.select %86, %84, %87 : vector<8x32xi1>, vector<8x32xf32>
    %cst_29 = arith.constant dense<0.000000e+00> : vector<8x32xf32>
    %89 = tpu.matmul %88, %63, %cst_29 {dimension_numbers = #tpu.dot_dimension_numbers<[1], [0], [0], [1], [0, 0, 1, 1], [], []>} : vector<8x32xf32>, vector<32x32xf32>, vector<8x32xf32> -> vector<8x32xf32>
    %90 = arith.addf %74, %89 : vector<8x32xf32>
    %91 = vector.broadcast %65 : vector<1x32xf32> to vector<8x32xf32>
    %92 = arith.addf %90, %91 : vector<8x32xf32>
    %cst_30 = arith.constant dense<0.000000e+00> : vector<8xf32>
    %93 = vector.multi_reduction <add>, %92, %cst_30 [1] : vector<8x32xf32> to vector<8xf32>
    %94 = vector.shape_cast %93 : vector<8xf32> to vector<8x1xf32>
    %cst_31 = arith.constant 3.200000e+01 : f32
    %95 = vector.broadcast %cst_31 : f32 to vector<8x1xf32>
    %96 = arith.divf %94, %95 : vector<8x1xf32>
    %97 = vector.broadcast %96 : vector<8x1xf32> to vector<8x32xf32>
    %98 = arith.subf %92, %97 : vector<8x32xf32>
    %99 = arith.mulf %98, %98 : vector<8x32xf32>
    %cst_32 = arith.constant dense<0.000000e+00> : vector<8xf32>
    %100 = vector.multi_reduction <add>, %99, %cst_32 [1] : vector<8x32xf32> to vector<8xf32>
    %101 = vector.shape_cast %100 : vector<8xf32> to vector<8x1xf32>
    %cst_33 = arith.constant 3.200000e+01 : f32
    %102 = vector.broadcast %cst_33 : f32 to vector<8x1xf32>
    %103 = arith.divf %101, %102 : vector<8x1xf32>
    %cst_34 = arith.constant 9.99999974E-6 : f32
    %104 = vector.broadcast %cst_34 : f32 to vector<8x1xf32>
    %105 = arith.addf %103, %104 : vector<8x1xf32>
    %106 = math.rsqrt %105 : vector<8x1xf32>
    %107 = vector.broadcast %106 : vector<8x1xf32> to vector<8x32xf32>
    %108 = arith.mulf %98, %107 : vector<8x32xf32>
    %109 = vector.broadcast %66 : vector<1x32xf32> to vector<8x32xf32>
    %110 = arith.mulf %108, %109 : vector<8x32xf32>
    %111 = vector.broadcast %67 : vector<1x32xf32> to vector<8x32xf32>
    %112 = arith.addf %110, %111 : vector<8x32xf32>
    %cst_35 = arith.constant 0.000000e+00 : f32
    %113 = vector.broadcast %cst_35 : f32 to vector<8x32xf32>
    %114 = arith.maximumf %112, %113 : vector<8x32xf32>
    %c128 = arith.constant 128 : index
    %c0_36 = arith.constant 0 : index
    %115 = vector.load %arg2[%c128, %c0_36] : memref<160x128xf32, #tpu.memory_space<vmem>>, vector<32x128xf32>
    %116 = vector.extract_strided_slice %7 {offsets = [8, 0], sizes = [1, 128], strides = [1, 1]} : vector<16x128xf32> to vector<1x128xf32>
    %cst_37 = arith.constant dense<0xFF800000> : vector<32xf32>
    %117 = vector.multi_reduction <maximumf>, %114, %cst_37 [0] : vector<8x32xf32> to vector<32xf32>
    %118 = vector.shape_cast %117 : vector<32xf32> to vector<1x32xf32>
    %cst_38 = arith.constant dense<0.000000e+00> : vector<1x128xf32>
    %119 = tpu.matmul %118, %115, %cst_38 {dimension_numbers = #tpu.dot_dimension_numbers<[1], [0], [0], [1], [0, 0, 1, 1], [], []>} : vector<1x32xf32>, vector<32x128xf32>, vector<1x128xf32> -> vector<1x128xf32>
    %120 = arith.addf %119, %116 : vector<1x128xf32>
    %c0_39 = arith.constant 0 : index
    %c0_40 = arith.constant 0 : index
    %121 = vector.load %arg4[%c0_39, %c0_40] : memref<1x128xf32, #tpu.memory_space<vmem>>, vector<1x128xf32>
    tpu.vector_store %arg4[%c0_39, %c0_40], %120 {strides = array<i32>} : memref<1x128xf32, #tpu.memory_space<vmem>>, vector<1x128xf32>,
    return
  }
}

</mosaic_0001>

<llo_original>
// kernel: gnn_forward.1
$region0: #{gnn_forward.1}
  #allocation0 [shape = 'u32[]', space=smem, size = 0x4, offset = 0x4, fixed_abs, tag = 'smem constant byte address 0x4 - core index']
  #allocation1 [shape = 'u32[144,128]{1,0:T(1,128)}', space=vmem, size = 0x12000, scoped, tag = 'internal scratch']
  %s0 = inlined_call_operand.vmem [shape: f32[8,8], index: 0, kind: input, shape index: {}]
  %s1 = inlined_call_operand.vmem [shape: f32[8,16], index: 1, kind: input, shape index: {}]
  %s2 = inlined_call_operand.vmem [shape: f32[160,128], index: 2, kind: input, shape index: {}]
  %s3 = inlined_call_operand.vmem [shape: f32[16,128], index: 3, kind: input, shape index: {}]
  %s4 = inlined_call_operand.hbm [shape: f32[1,128], index: 4, kind: output, shape index: {}]
  %s5 = sld [smem:[#allocation0]]
  $region26: #{gnn_forward.1} parent=0
    _
  %s7 = ssub.s32 1, %s5
  %s8 = scalar_select 0, %s7, %s5
  $region1: #{gnn_forward.1} parent=0
    #allocation2 [shape = 'u8[512]{0}', space=vmem, size = 0x400, scoped, tag = 'output window, operand 0, single buffered']
    #allocation3 [shape = 's32[1]{0}', space=sflag, size = 0x4, scoped, tag = 'scoped memory for gnn_forward.1']
    %9 = vsyncpa [#allocation3], 0
    // Predicated region
    $region2: #{gnn_forward.1} parent=1 // pred_check
      _
    $region3: #{gnn_forward.1} parent=1 // pred_check_branch
      %11 = sbr.rel (0) target = $region5
    $region4: #{gnn_forward.1} parent=1 // pred_region
      _
    $region5: #{gnn_forward.1} parent=1 // pred_fallthru
      _
    // Predicated region
    $region6: #{gnn_forward.1} parent=1 // pred_check
      _
    $region7: #{gnn_forward.1} parent=1 // pred_check_branch
      %13 = sbr.rel (0) target = $region9
    $region8: #{gnn_forward.1} parent=1 // pred_region
      _
    $region9: #{gnn_forward.1} parent=1 // pred_fallthru
      _
    // Predicated region
    $region10: #{gnn_forward.1} parent=1 // pred_check
      _
    $region11: #{gnn_forward.1} parent=1 // pred_check_branch
      %15 = sbr.rel (0) target = $region13
    $region12: #{gnn_forward.1} parent=1 // pred_region
      _
    $region13: #{gnn_forward.1} parent=1 // pred_fallthru
      _
    // Predicated region
    $region14: #{gnn_forward.1} parent=1 // pred_check
      _
    $region15: #{gnn_forward.1} parent=1 // pred_check_branch
      %17 = sbr.rel (0) target = $region17
    $region16: #{gnn_forward.1} parent=1 // pred_region
      _
    $region17: #{gnn_forward.1} parent=1 // pred_fallthru
      _
    %v18 = vld [vmem:[%s0] sm:$0xff]
    %vm19 = vcmp.gt.f32.partialorder %v18, 0.5
    %vm20 = vcmask 64512
    %v21 = vsel %vm20, %v18, 0.0
    %22 = vadd.xlane.f32.xlu0 %v21
    %v23 = vpop.xlane.xlu0 %22
    %vm24 = vcmp.gt.f32.partialorder %v23, 0.0
    %v25 = vld [vmem:[%s3] sm:$0xff]
    %v26 = vld [vmem:[%s3 + $0x8] sm:$0xff]
    %v27 = vld [vmem:[%s1] sm:$0xff]
    %v28 = vld [vmem:[%s2] sm:$0xff]
    %v29 = vld [vmem:[%s2 + $0x8] sm:$0xff]
    %v30 = vld [vmem:[%s2 + $0x20] sm:$0xff]
    %v31 = vld [vmem:[%s2 + $0x28] sm:$0xff]
    %vm32 = vcmask 130048
    %v34 = vsel %vm32, %v27, 0
    %36 = vmatprep.subr.mxu0 0.0
    %37 = vmatpush1.msra.mxu0 0.0
    %38 = vmatprep.subr.mxu0 0.0
    %39 = vmatpush1.msra.mxu0 0.0
    %40 = vmatprep.subr.mxu0 0.0
    %41 = vmatpush1.msra.mxu0 0.0
    %42 = vmatprep.subr.mxu0 0.0
    %43 = vmatpush1.msra.mxu0 0.0
    %44 = vmatprep.subr.mxu0 0.0
    %45 = vmatpush1.msra.mxu0 0.0
    %46 = vmatprep.subr.mxu0 0.0
    %47 = vmatpush1.msra.mxu0 0.0
    %48 = vmatprep.subr.mxu0 0.0
    %49 = vmatpush1.msra.mxu0 0.0
    %50 = vmatprep.subr.mxu0 0.0
    %51 = vmatpush1.msra.mxu0 0.0
    %52 = vmatprep.subr.mxu0 0.0
    %53 = vmatpush1.msra.mxu0 0.0
    %54 = vmatprep.subr.mxu0 0.0
    %55 = vmatpush1.msra.mxu0 0.0
    %56 = vmatprep.subr.mxu0 0.0
    %57 = vmatpush1.msra.mxu0 0.0
    %58 = vmatprep.subr.mxu0 0.0
    %59 = vmatpush1.msra.mxu0 0.0
    %60 = vmatprep.subr.mxu0 0.0
    %61 = vmatpush1.msra.mxu0 0.0
    %62 = vmatprep.subr.mxu0 0.0
    %63 = vmatpush1.msra.mxu0 0.0
    %64 = vmatprep.subr.mxu0 0.0
    %65 = vmatpush1.msra.mxu0 %v29
    %66 = vmatprep.subr.mxu0 0.0
    %67 = vmatpush1.msra.mxu0 %v28
    %68 = vmatprep.subr.mxu0 0.0
    %69 = vmatpush2.msra.mxu0 0.0
    %70 = vmatprep.subr.mxu0 0.0
    %71 = vmatpush2.msra.mxu0 0.0
    %72 = vmatprep.subr.mxu0 0.0
    %73 = vmatpush2.msra.mxu0 0.0
    %74 = vmatprep.subr.mxu0 0.0
    %75 = vmatpush2.msra.mxu0 0.0
    %76 = vmatprep.subr.mxu0 0.0
    %77 = vmatpush2.msra.mxu0 0.0
    %78 = vmatprep.subr.mxu0 0.0
    %79 = vmatpush2.msra.mxu0 0.0
    %80 = vmatprep.subr.mxu0 0.0
    %81 = vmatpush2.msra.mxu0 0.0
    %82 = vmatprep.subr.mxu0 0.0
    %83 = vmatpush2.msra.mxu0 0.0
    %84 = vmatprep.subr.mxu0 0.0
    %85 = vmatpush2.msra.mxu0 0.0
    %86 = vmatprep.subr.mxu0 0.0
    %87 = vmatpush2.msra.mxu0 0.0
    %88 = vmatprep.subr.mxu0 0.0
    %89 = vmatpush2.msra.mxu0 0.0
    %90 = vmatprep.subr.mxu0 0.0
    %91 = vmatpush2.msra.mxu0 0.0
    %92 = vmatprep.subr.mxu0 0.0
    %93 = vmatpush2.msra.mxu0 0.0
    %94 = vmatprep.subr.mxu0 0.0
    %95 = vmatpush2.msra.mxu0 0.0
    %96 = vmatprep.subr.mxu0 0.0
    %97 = vmatpush2.msra.mxu0 0.0
    %98 = vmatprep.subr.mxu0 0.0
    %99 = vmatpush2.msra.mxu0 0.0
    %100 = vmatprep.mubr.f32.mxu0 0.0
    %101 = vmatmul.mubr.f32.gmra.mxu0 %v34
    %v102 = vpop.f32.mrf.mxu0
    %v103 = vadd.f32 0.0, %v102
    %v104 = vpop.f32.mrf.mxu0
    %105 = vdwg.mxu0
    %v106 = vlaneseq
    %v107 = vshrl.u32 %v106, 7
    %v108 = vsub.s32 0, %v107
    %v109 = vrot.slane %v25, %v108
    %v110 = vadd.f32 %v103, %v109
    %v111 = vmax.f32 %v110, 0.0
    %112 = vxpose.xlu0.b32.start [1/16] %v111, 128
    %113 = vxpose.xlu0.b32.cont [2/16] 0.0, 128
    %114 = vxpose.xlu0.b32.cont [3/16] 0.0, 128
    %115 = vxpose.xlu0.b32.cont [4/16] 0.0, 128
    %116 = vxpose.xlu0.b32.cont [5/16] 0.0, 128
    %117 = vxpose.xlu0.b32.cont [6/16] 0.0, 128
    %118 = vxpose.xlu0.b32.cont [7/16] 0.0, 128
    %119 = vxpose.xlu0.b32.cont [8/16] 0.0, 128
    %120 = vxpose.xlu0.b32.cont [9/16] 0.0, 128
    %121 = vxpose.xlu0.b32.cont [10/16] 0.0, 128
    %122 = vxpose.xlu0.b32.cont [11/16] 0.0, 128
    %123 = vxpose.xlu0.b32.cont [12/16] 0.0, 128
    %124 = vxpose.xlu0.b32.cont [13/16] 0.0, 128
    %125 = vxpose.xlu0.b32.cont [14/16] 0.0, 128
    %126 = vxpose.xlu0.b32.cont [15/16] 0.0, 128
    %127 = vxpose.xlu0.b32.end [16/16] 0.0, 128
    %v128 = vpop.trf.xlu0
    %v129 = vpop.trf.xlu0
    %v130 = vpop.trf.xlu0
    %v131 = vpop.trf.xlu0
    %v132 = vpop.trf.xlu0
    %v133 = vpop.trf.xlu0
    %v134 = vpop.trf.xlu0
    %v135 = vpop.trf.xlu0
    %v136 = vpop.trf.xlu0
    %v137 = vpop.trf.xlu0
    %v138 = vpop.trf.xlu0
    %v139 = vpop.trf.xlu0
    %v140 = vpop.trf.xlu0
    %v141 = vpop.trf.xlu0
    %v142 = vpop.trf.xlu0
    %v143 = vpop.trf.xlu0
    %v144 = vsel %vm19, 1, 0
    %v145 = vcombine.high %v144, %v144
    %v147 = vunpack.c.l.s4 1966171168
    %v148 = vunpack.c.0.s8 %v147
    %v149 = vlaneseq
    %v150 = vshrl.u32 %v149, 7
    %v151 = vsub.s32 %v148, %v150
    %v152 = vrot.slane %v144, %v151
    %v154 = vunpack.c.l.s4 1966171168
    %v155 = vunpack.c.0.s8 %v154
    %v156 = vlaneseq
    %v157 = vshrl.u32 %v156, 7
    %v158 = vsub.s32 %v155, %v157
    %v159 = vrot.slane %v145, %v158
    %v160 = vcombine.high %v152, %v152
    %v161 = vcombine.high %v159, %v159
    %v163 = vunpack.c.l.s4 1966171168
    %v164 = vunpack.c.0.s8 %v163
    %v165 = vlaneseq
    %v166 = vshrl.u32 %v165, 7
    %v167 = vsub.s32 %v164, %v166
    %v168 = vrot.slane %v152, %v167
    %v170 = vunpack.c.l.s4 1966171168
    %v171 = vunpack.c.0.s8 %v170
    %v172 = vlaneseq
    %v173 = vshrl.u32 %v172, 7
    %v174 = vsub.s32 %v171, %v173
    %v175 = vrot.slane %v159, %v174
    %v177 = vunpack.c.l.s4 1966171168
    %v178 = vunpack.c.0.s8 %v177
    %v179 = vlaneseq
    %v180 = vshrl.u32 %v179, 7
    %v181 = vsub.s32 %v178, %v180
    %v182 = vrot.slane %v160, %v181
    %v184 = vunpack.c.l.s4 1966171168
    %v185 = vunpack.c.0.s8 %v184
    %v186 = vlaneseq
    %v187 = vshrl.u32 %v186, 7
    %v188 = vsub.s32 %v185, %v187
    %v189 = vrot.slane %v161, %v188
    %v190 = vcombine.high %v168, %v168
    %v191 = vcombine.high %v175, %v175
    %v192 = vcombine.high %v182, %v182
    %v193 = vcombine.high %v189, %v189
    %vm194 = vcmp.ne.s32.totalorder %v168, 0
    %vm195 = vcmp.ne.s32.totalorder %v182, 0
    %vm196 = vcmp.ne.s32.totalorder %v190, 0
    %vm197 = vcmp.ne.s32.totalorder %v192, 0
    %vm198 = vcmp.ne.s32.totalorder %v175, 0
    %vm199 = vcmp.ne.s32.totalorder %v189, 0
    %vm200 = vcmp.ne.s32.totalorder %v191, 0
    %vm201 = vcmp.ne.s32.totalorder %v193, 0
    %v202 = vsel %vm194, 1, 0
    %v203 = vsel %vm195, 1, 0
    %v204 = vsel %vm196, 1, 0
    %v205 = vsel %vm197, 1, 0
    %v206 = vsel %vm198, 1, 0
    %v207 = vsel %vm199, 1, 0
    %v208 = vsel %vm200, 1, 0
    %v209 = vsel %vm201, 1, 0
    %v210 = vlaneseq
    %v211 = vshrl.u32 %v210, 7
    %v212 = vsub.s32 0, %v211
    %v213 = vrot.slane %v202, %v212
    %v214 = vlaneseq
    %v215 = vshrl.u32 %v214, 7
    %v216 = vsub.s32 0, %v215
    %v217 = vrot.slane %v203, %v216
    %v218 = vlaneseq
    %v219 = vshrl.u32 %v218, 7
    %v220 = vsub.s32 0, %v219
    %v221 = vrot.slane %v204, %v220
    %v222 = vlaneseq
    %v223 = vshrl.u32 %v222, 7
    %v224 = vsub.s32 0, %v223
    %v225 = vrot.slane %v205, %v224
    %v226 = vlaneseq
    %v227 = vshrl.u32 %v226, 7
    %v228 = vsub.s32 0, %v227
    %v229 = vrot.slane %v206, %v228
    %v230 = vlaneseq
    %v231 = vshrl.u32 %v230, 7
    %v232 = vsub.s32 0, %v231
    %v233 = vrot.slane %v207, %v232
    %v234 = vlaneseq
    %v235 = vshrl.u32 %v234, 7
    %v236 = vsub.s32 0, %v235
    %v237 = vrot.slane %v208, %v236
    %v238 = vlaneseq
    %v239 = vshrl.u32 %v238, 7
    %v240 = vsub.s32 0, %v239
    %v241 = vrot.slane %v209, %v240
    %vm242 = vcmp.eq.s32.totalorder %v213, 1
    %vm243 = vcmp.eq.s32.totalorder %v217, 1
    %vm244 = vcmp.eq.s32.totalorder %v221, 1
    %vm245 = vcmp.eq.s32.totalorder %v225, 1
    %vm246 = vcmp.eq.s32.totalorder %v229, 1
    %vm247 = vcmp.eq.s32.totalorder %v233, 1
    %vm248 = vcmp.eq.s32.totalorder %v237, 1
    %vm249 = vcmp.eq.s32.totalorder %v241, 1
    %v250 = vsel %vm242, %v128, -1e+30
    %v251 = vsel %vm242, %v129, -1e+30
    %v252 = vsel %vm243, %v128, -1e+30
    %v253 = vsel %vm243, %v129, -1e+30
    %v254 = vsel %vm244, %v128, -1e+30
    %v255 = vsel %vm244, %v129, -1e+30
    %v256 = vsel %vm245, %v128, -1e+30
    %v257 = vsel %vm245, %v129, -1e+30
    %v258 = vsel %vm246, %v128, -1e+30
    %v259 = vsel %vm246, %v129, -1e+30
    %v260 = vsel %vm247, %v128, -1e+30
    %v261 = vsel %vm247, %v129, -1e+30
    %v262 = vsel %vm248, %v128, -1e+30
    %v263 = vsel %vm248, %v129, -1e+30
    %v264 = vsel %vm249, %v128, -1e+30
    %v265 = vsel %vm249, %v129, -1e+30
    %v266 = vsel %vm20, %v250, -inf
    %267 = vmax.xlane.f32.xlu0 %v266
    %v268 = vpop.xlane.xlu0 %267
    %v269 = vsel %vm20, %v251, -inf
    %270 = vmax.xlane.f32.xlu0 %v269
    %v271 = vpop.xlane.xlu0 %270
    %v272 = vsel %vm20, %v252, -inf
    %273 = vmax.xlane.f32.xlu0 %v272
    %v274 = vpop.xlane.xlu0 %273
    %v275 = vsel %vm20, %v253, -inf
    %276 = vmax.xlane.f32.xlu0 %v275
    %v277 = vpop.xlane.xlu0 %276
    %v278 = vsel %vm20, %v254, -inf
    %279 = vmax.xlane.f32.xlu0 %v278
    %v280 = vpop.xlane.xlu0 %279
    %v281 = vsel %vm20, %v255, -inf
    %282 = vmax.xlane.f32.xlu0 %v281
    %v283 = vpop.xlane.xlu0 %282
    %v284 = vsel %vm20, %v256, -inf
    %285 = vmax.xlane.f32.xlu0 %v284
    %v286 = vpop.xlane.xlu0 %285
    %v287 = vsel %vm20, %v257, -inf
    %288 = vmax.xlane.f32.xlu0 %v287
    %v289 = vpop.xlane.xlu0 %288
    %v290 = vsel %vm20, %v258, -inf
    %291 = vmax.xlane.f32.xlu0 %v290
    %v292 = vpop.xlane.xlu0 %291
    %v293 = vsel %vm20, %v259, -inf
    %294 = vmax.xlane.f32.xlu0 %v293
    %v295 = vpop.xlane.xlu0 %294
    %v296 = vsel %vm20, %v260, -inf
    %297 = vmax.xlane.f32.xlu0 %v296
    %v298 = vpop.xlane.xlu0 %297
    %v299 = vsel %vm20, %v261, -inf
    %300 = vmax.xlane.f32.xlu0 %v299
    %v301 = vpop.xlane.xlu0 %300
    %v302 = vsel %vm20, %v262, -inf
    %303 = vmax.xlane.f32.xlu0 %v302
    %v304 = vpop.xlane.xlu0 %303
    %v305 = vsel %vm20, %v263, -inf
    %306 = vmax.xlane.f32.xlu0 %v305
    %v307 = vpop.xlane.xlu0 %306
    %v308 = vsel %vm20, %v264, -inf
    %309 = vmax.xlane.f32.xlu0 %v308
    %v310 = vpop.xlane.xlu0 %309
    %v311 = vsel %vm20, %v265, -inf
    %312 = vmax.xlane.f32.xlu0 %v311
    %v313 = vpop.xlane.xlu0 %312
    %v314 = vsel %vm24, 1, 0
    %vm315 = vcmp.eq.s32.totalorder %v314, 1
    %v332 = vlaneseq
    %v333 = vand.u32 %v332, 127
    %v334 = vlaneseq
    %v335 = vshrl.u32 %v334, 7
    %v336 = vsub.s32 %v333, %v335
    %v337 = vrot.slane %v268, %v336
    %v338 = vadd.s32 %v333, 4294967288
    %v339 = vlaneseq
    %v340 = vshrl.u32 %v339, 7
    %v341 = vsub.s32 %v338, %v340
    %v342 = vrot.slane %v271, %v341
    %vm343 = vcmask 130112
    %v344 = vsel %vm343, %v342, %v337
    %v345 = vlaneseq
    %v346 = vshrl.u32 %v345, 7
    %v347 = vsub.s32 %v333, %v346
    %v348 = vrot.slane %v274, %v347
    %v349 = vlaneseq
    %v350 = vshrl.u32 %v349, 7
    %v351 = vsub.s32 %v338, %v350
    %v352 = vrot.slane %v277, %v351
    %v353 = vsel %vm343, %v352, %v348
    %v354 = vlaneseq
    %v355 = vshrl.u32 %v354, 7
    %v356 = vsub.s32 %v333, %v355
    %v357 = vrot.slane %v280, %v356
    %v358 = vlaneseq
    %v359 = vshrl.u32 %v358, 7
    %v360 = vsub.s32 %v338, %v359
    %v361 = vrot.slane %v283, %v360
    %v362 = vsel %vm343, %v361, %v357
    %v363 = vlaneseq
    %v364 = vshrl.u32 %v363, 7
    %v365 = vsub.s32 %v333, %v364
    %v366 = vrot.slane %v286, %v365
    %v367 = vlaneseq
    %v368 = vshrl.u32 %v367, 7
    %v369 = vsub.s32 %v338, %v368
    %v370 = vrot.slane %v289, %v369
    %v371 = vsel %vm343, %v370, %v366
    %v372 = vlaneseq
    %v373 = vshrl.u32 %v372, 7
    %v374 = vsub.s32 %v333, %v373
    %v375 = vrot.slane %v292, %v374
    %v376 = vlaneseq
    %v377 = vshrl.u32 %v376, 7
    %v378 = vsub.s32 %v338, %v377
    %v379 = vrot.slane %v295, %v378
    %v380 = vsel %vm343, %v379, %v375
    %v381 = vlaneseq
    %v382 = vshrl.u32 %v381, 7
    %v383 = vsub.s32 %v333, %v382
    %v384 = vrot.slane %v298, %v383
    %v385 = vlaneseq
    %v386 = vshrl.u32 %v385, 7
    %v387 = vsub.s32 %v338, %v386
    %v388 = vrot.slane %v301, %v387
    %v389 = vsel %vm343, %v388, %v384
    %v390 = vlaneseq
    %v391 = vshrl.u32 %v390, 7
    %v392 = vsub.s32 %v333, %v391
    %v393 = vrot.slane %v304, %v392
    %v394 = vlaneseq
    %v395 = vshrl.u32 %v394, 7
    %v396 = vsub.s32 %v338, %v395
    %v397 = vrot.slane %v307, %v396
    %v398 = vsel %vm343, %v397, %v393
    %v399 = vlaneseq
    %v400 = vshrl.u32 %v399, 7
    %v401 = vsub.s32 %v333, %v400
    %v402 = vrot.slane %v310, %v401
    %v403 = vlaneseq
    %v404 = vshrl.u32 %v403, 7
    %v405 = vsub.s32 %v338, %v404
    %v406 = vrot.slane %v313, %v405
    %v407 = vsel %vm343, %v406, %v402
    %vm408 = vcmask 1041409
    %v409 = vsel %vm408, %v353, %v344
    %vm410 = vcmask 1042434
    %v411 = vsel %vm410, %v362, %v409
    %vm412 = vcmask 1043459
    %v413 = vsel %vm412, %v371, %v411
    %vm414 = vcmask 1044484
    %v415 = vsel %vm414, %v380, %v413
    %vm416 = vcmask 1045509
    %v417 = vsel %vm416, %v389, %v415
    %vm418 = vcmask 1046534
    %v419 = vsel %vm418, %v398, %v417
    %vm420 = vcmask 1047559
    %v421 = vsel %vm420, %v407, %v419
    %v423 = vsel %vm315, %v421, 0.0
    %v425 = vsel %vm32, %v423, 0
    %427 = vmatprep.subr.mxu0 0.0
    %428 = vmatpush1.msra.mxu0 0.0
    %429 = vmatprep.subr.mxu0 0.0
    %430 = vmatpush1.msra.mxu0 0.0
    %431 = vmatprep.subr.mxu0 0.0
    %432 = vmatpush1.msra.mxu0 0.0
    %433 = vmatprep.subr.mxu0 0.0
    %434 = vmatpush1.msra.mxu0 0.0
    %435 = vmatprep.subr.mxu0 0.0
    %436 = vmatpush1.msra.mxu0 0.0
    %437 = vmatprep.subr.mxu0 0.0
    %438 = vmatpush1.msra.mxu0 0.0
    %439 = vmatprep.subr.mxu0 0.0
    %440 = vmatpush1.msra.mxu0 0.0
    %441 = vmatprep.subr.mxu0 0.0
    %442 = vmatpush1.msra.mxu0 0.0
    %443 = vmatprep.subr.mxu0 0.0
    %444 = vmatpush1.msra.mxu0 0.0
    %445 = vmatprep.subr.mxu0 0.0
    %446 = vmatpush1.msra.mxu0 0.0
    %447 = vmatprep.subr.mxu0 0.0
    %448 = vmatpush1.msra.mxu0 0.0
    %449 = vmatprep.subr.mxu0 0.0
    %450 = vmatpush1.msra.mxu0 0.0
    %451 = vmatprep.subr.mxu0 0.0
    %452 = vmatpush1.msra.mxu0 0.0
    %453 = vmatprep.subr.mxu0 0.0
    %454 = vmatpush1.msra.mxu0 0.0
    %455 = vmatprep.subr.mxu0 0.0
    %456 = vmatpush1.msra.mxu0 %v31
    %457 = vmatprep.subr.mxu0 0.0
    %458 = vmatpush1.msra.mxu0 %v30
    %459 = vmatprep.subr.mxu0 0.0
    %460 = vmatpush2.msra.mxu0 0.0
    %461 = vmatprep.subr.mxu0 0.0
    %462 = vmatpush2.msra.mxu0 0.0
    %463 = vmatprep.subr.mxu0 0.0
    %464 = vmatpush2.msra.mxu0 0.0
    %465 = vmatprep.subr.mxu0 0.0
    %466 = vmatpush2.msra.mxu0 0.0
    %467 = vmatprep.subr.mxu0 0.0
    %468 = vmatpush2.msra.mxu0 0.0
    %469 = vmatprep.subr.mxu0 0.0
    %470 = vmatpush2.msra.mxu0 0.0
    %471 = vmatprep.subr.mxu0 0.0
    %472 = vmatpush2.msra.mxu0 0.0
    %473 = vmatprep.subr.mxu0 0.0
    %474 = vmatpush2.msra.mxu0 0.0
    %475 = vmatprep.subr.mxu0 0.0
    %476 = vmatpush2.msra.mxu0 0.0
    %477 = vmatprep.subr.mxu0 0.0
    %478 = vmatpush2.msra.mxu0 0.0
    %479 = vmatprep.subr.mxu0 0.0
    %480 = vmatpush2.msra.mxu0 0.0
    %481 = vmatprep.subr.mxu0 0.0
    %482 = vmatpush2.msra.mxu0 0.0
    %483 = vmatprep.subr.mxu0 0.0
    %484 = vmatpush2.msra.mxu0 0.0
    %485 = vmatprep.subr.mxu0 0.0
    %486 = vmatpush2.msra.mxu0 0.0
    %487 = vmatprep.subr.mxu0 0.0
    %488 = vmatpush2.msra.mxu0 0.0
    %489 = vmatprep.subr.mxu0 0.0
    %490 = vmatpush2.msra.mxu0 0.0
    %491 = vmatprep.mubr.f32.mxu0 0.0
    %492 = vmatmul.mubr.f32.gmra.mxu0 %v425
    %v493 = vpop.f32.mrf.mxu0
    %v494 = vadd.f32 0.0, %v493
    %v495 = vpop.f32.mrf.mxu0
    %496 = vdwg.mxu0
    %498 = vrot.lane.b32.xlu0 %v494, 16
    %v499 = vpop.permute.xlu0 %498
    %v501 = vadd.f32 %v103, %v499
    %v502 = vlaneseq
    %v503 = vshrl.u32 %v502, 7
    %v504 = vsub.s32 1, %v503
    %v505 = vrot.slane %v25, %v504
    %507 = vrot.lane.b32.xlu0 %v505, 16
    %v508 = vpop.permute.xlu0 %507
    %v510 = vadd.f32 %v501, %v508
    %512 = vrot.lane.b32.xlu0 %v510, 112
    %v513 = vpop.permute.xlu0 %512
    %vm515 = vcmask 261120
    %v516 = vsel %vm515, %v513, 0.0
    %517 = vadd.xlane.f32.xlu0 %v516
    %v518 = vpop.xlane.xlu0 %517
    %v519 = vrcp.pop 32.0
    %v520 = vmul.f32 %v518, %v519
    %v521 = vsub.f32 %v510, %v520
    %v522 = vmul.f32 %v521, %v521
    %524 = vrot.lane.b32.xlu0 %v522, 112
    %v525 = vpop.permute.xlu0 %524
    %v527 = vsel %vm515, %v525, 0.0
    %528 = vadd.xlane.f32.xlu0 %v527
    %v529 = vpop.xlane.xlu0 %528
    %v530 = vmul.f32 %v529, %v519
    %v531 = vadd.f32 %v530, 1e-05
    %v532 = vrsqrt.pop %v531
    %v533 = vmul.f32 %v521, %v532
    %v534 = vlaneseq
    %v535 = vshrl.u32 %v534, 7
    %v536 = vsub.s32 2, %v535
    %v537 = vrot.slane %v25, %v536
    %539 = vrot.lane.b32.xlu0 %v537, 16
    %v540 = vpop.permute.xlu0 %539
    %v542 = vmul.f32 %v533, %v540
    %v543 = vlaneseq
    %v544 = vshrl.u32 %v543, 7
    %v545 = vsub.s32 3, %v544
    %v546 = vrot.slane %v25, %v545
    %548 = vrot.lane.b32.xlu0 %v546, 16
    %v549 = vpop.permute.xlu0 %548
    %v551 = vadd.f32 %v542, %v549
    %v552 = vmax.f32 %v551, 0.0
    %v553 = vld [vmem:[%s2 + $0x40] sm:$0xff]
    %v554 = vld [vmem:[%s2 + $0x48] sm:$0xff]
    %v555 = vld [vmem:[%s2 + $0x50] sm:$0xff]
    %v556 = vld [vmem:[%s2 + $0x58] sm:$0xff]
    %v557 = vld [vmem:[%s2 + $0x60] sm:$0xff]
    %v558 = vld [vmem:[%s2 + $0x68] sm:$0xff]
    %v559 = vld [vmem:[%s2 + $0x70] sm:$0xff]
    %v560 = vld [vmem:[%s2 + $0x78] sm:$0xff]
    %562 = vrot.lane.b32.xlu0 %v552, 112
    %v563 = vpop.permute.xlu0 %562
    %v564 = vsel %vm515, %v563, 0
    %566 = vmatprep.subr.mxu0 0.0
    %567 = vmatpush1.msra.mxu0 0.0
    %568 = vmatprep.subr.mxu0 0.0
    %569 = vmatpush1.msra.mxu0 0.0
    %570 = vmatprep.subr.mxu0 0.0
    %571 = vmatpush1.msra.mxu0 0.0
    %572 = vmatprep.subr.mxu0 0.0
    %573 = vmatpush1.msra.mxu0 0.0
    %574 = vmatprep.subr.mxu0 0.0
    %575 = vmatpush1.msra.mxu0 0.0
    %576 = vmatprep.subr.mxu0 0.0
    %577 = vmatpush1.msra.mxu0 0.0
    %578 = vmatprep.subr.mxu0 0.0
    %579 = vmatpush1.msra.mxu0 0.0
    %580 = vmatprep.subr.mxu0 0.0
    %581 = vmatpush1.msra.mxu0 0.0
    %582 = vmatprep.subr.mxu0 0.0
    %583 = vmatpush1.msra.mxu0 0.0
    %584 = vmatprep.subr.mxu0 0.0
    %585 = vmatpush1.msra.mxu0 0.0
    %586 = vmatprep.subr.mxu0 0.0
    %587 = vmatpush1.msra.mxu0 0.0
    %588 = vmatprep.subr.mxu0 0.0
    %589 = vmatpush1.msra.mxu0 0.0
    %590 = vmatprep.subr.mxu0 0.0
    %591 = vmatpush1.msra.mxu0 %v556
    %592 = vmatprep.subr.mxu0 0.0
    %593 = vmatpush1.msra.mxu0 %v555
    %594 = vmatprep.subr.mxu0 0.0
    %595 = vmatpush1.msra.mxu0 %v554
    %596 = vmatprep.subr.mxu0 0.0
    %597 = vmatpush1.msra.mxu0 %v553
    %598 = vmatprep.subr.mxu0 0.0
    %599 = vmatpush2.msra.mxu0 0.0
    %600 = vmatprep.subr.mxu0 0.0
    %601 = vmatpush2.msra.mxu0 0.0
    %602 = vmatprep.subr.mxu0 0.0
    %603 = vmatpush2.msra.mxu0 0.0
    %604 = vmatprep.subr.mxu0 0.0
    %605 = vmatpush2.msra.mxu0 0.0
    %606 = vmatprep.subr.mxu0 0.0
    %607 = vmatpush2.msra.mxu0 0.0
    %608 = vmatprep.subr.mxu0 0.0
    %609 = vmatpush2.msra.mxu0 0.0
    %610 = vmatprep.subr.mxu0 0.0
    %611 = vmatpush2.msra.mxu0 0.0
    %612 = vmatprep.subr.mxu0 0.0
    %613 = vmatpush2.msra.mxu0 0.0
    %614 = vmatprep.subr.mxu0 0.0
    %615 = vmatpush2.msra.mxu0 0.0
    %616 = vmatprep.subr.mxu0 0.0
    %617 = vmatpush2.msra.mxu0 0.0
    %618 = vmatprep.subr.mxu0 0.0
    %619 = vmatpush2.msra.mxu0 0.0
    %620 = vmatprep.subr.mxu0 0.0
    %621 = vmatpush2.msra.mxu0 0.0
    %622 = vmatprep.subr.mxu0 0.0
    %623 = vmatpush2.msra.mxu0 0.0
    %624 = vmatprep.subr.mxu0 0.0
    %625 = vmatpush2.msra.mxu0 0.0
    %626 = vmatprep.subr.mxu0 0.0
    %627 = vmatpush2.msra.mxu0 0.0
    %628 = vmatprep.subr.mxu0 0.0
    %629 = vmatpush2.msra.mxu0 0.0
    %630 = vmatprep.mubr.f32.mxu0 0.0
    %631 = vmatmul.mubr.f32.gmra.mxu0 %v564
    %v632 = vpop.f32.mrf.mxu0
    %v633 = vadd.f32 0.0, %v632
    %v634 = vpop.f32.mrf.mxu0
    %635 = vdwg.mxu0
    %v636 = vlaneseq
    %v637 = vshrl.u32 %v636, 7
    %v638 = vsub.s32 4, %v637
    %v639 = vrot.slane %v25, %v638
    %v640 = vadd.f32 %v633, %v639
    %v641 = vmax.f32 %v640, 0.0
    %642 = vxpose.xlu0.b32.start [1/16] %v641, 128
    %643 = vxpose.xlu0.b32.cont [2/16] 0.0, 128
    %644 = vxpose.xlu0.b32.cont [3/16] 0.0, 128
    %645 = vxpose.xlu0.b32.cont [4/16] 0.0, 128
    %646 = vxpose.xlu0.b32.cont [5/16] 0.0, 128
    %647 = vxpose.xlu0.b32.cont [6/16] 0.0, 128
    %648 = vxpose.xlu0.b32.cont [7/16] 0.0, 128
    %649 = vxpose.xlu0.b32.cont [8/16] 0.0, 128
    %650 = vxpose.xlu0.b32.cont [9/16] 0.0, 128
    %651 = vxpose.xlu0.b32.cont [10/16] 0.0, 128
    %652 = vxpose.xlu0.b32.cont [11/16] 0.0, 128
    %653 = vxpose.xlu0.b32.cont [12/16] 0.0, 128
    %654 = vxpose.xlu0.b32.cont [13/16] 0.0, 128
    %655 = vxpose.xlu0.b32.cont [14/16] 0.0, 128
    %656 = vxpose.xlu0.b32.cont [15/16] 0.0, 128
    %657 = vxpose.xlu0.b32.end [16/16] 0.0, 128
    %v658 = vpop.trf.xlu0
    %v659 = vpop.trf.xlu0
    %v660 = vpop.trf.xlu0
    %v661 = vpop.trf.xlu0
    %v662 = vpop.trf.xlu0
    %v663 = vpop.trf.xlu0
    %v664 = vpop.trf.xlu0
    %v665 = vpop.trf.xlu0
    %v666 = vpop.trf.xlu0
    %v667 = vpop.trf.xlu0
    %v668 = vpop.trf.xlu0
    %v669 = vpop.trf.xlu0
    %v670 = vpop.trf.xlu0
    %v671 = vpop.trf.xlu0
    %v672 = vpop.trf.xlu0
    %v673 = vpop.trf.xlu0
    %v674 = vsel %vm242, %v658, -1e+30
    %v675 = vsel %vm242, %v659, -1e+30
    %v676 = vsel %vm242, %v660, -1e+30
    %v677 = vsel %vm242, %v661, -1e+30
    %v678 = vsel %vm243, %v658, -1e+30
    %v679 = vsel %vm243, %v659, -1e+30
    %v680 = vsel %vm243, %v660, -1e+30
    %v681 = vsel %vm243, %v661, -1e+30
    %v682 = vsel %vm244, %v658, -1e+30
    %v683 = vsel %vm244, %v659, -1e+30
    %v684 = vsel %vm244, %v660, -1e+30
    %v685 = vsel %vm244, %v661, -1e+30
    %v686 = vsel %vm245, %v658, -1e+30
    %v687 = vsel %vm245, %v659, -1e+30
    %v688 = vsel %vm245, %v660, -1e+30
    %v689 = vsel %vm245, %v661, -1e+30
    %v690 = vsel %vm246, %v658, -1e+30
    %v691 = vsel %vm246, %v659, -1e+30
    %v692 = vsel %vm246, %v660, -1e+30
    %v693 = vsel %vm246, %v661, -1e+30
    %v694 = vsel %vm247, %v658, -1e+30
    %v695 = vsel %vm247, %v659, -1e+30
    %v696 = vsel %vm247, %v660, -1e+30
    %v697 = vsel %vm247, %v661, -1e+30
    %v698 = vsel %vm248, %v658, -1e+30
    %v699 = vsel %vm248, %v659, -1e+30
    %v700 = vsel %vm248, %v660, -1e+30
    %v701 = vsel %vm248, %v661, -1e+30
    %v702 = vsel %vm249, %v658, -1e+30
    %v703 = vsel %vm249, %v659, -1e+30
    %v704 = vsel %vm249, %v660, -1e+30
    %v705 = vsel %vm249, %v661, -1e+30
    %v706 = vsel %vm20, %v674, -inf
    %707 = vmax.xlane.f32.xlu0 %v706
    %v708 = vpop.xlane.xlu0 %707
    %v709 = vsel %vm20, %v675, -inf
    %710 = vmax.xlane.f32.xlu0 %v709
    %v711 = vpop.xlane.xlu0 %710
    %v712 = vsel %vm20, %v676, -inf
    %713 = vmax.xlane.f32.xlu0 %v712
    %v714 = vpop.xlane.xlu0 %713
    %v715 = vsel %vm20, %v677, -inf
    %716 = vmax.xlane.f32.xlu0 %v715
    %v717 = vpop.xlane.xlu0 %716
    %v718 = vsel %vm20, %v678, -inf
    %719 = vmax.xlane.f32.xlu0 %v718
    %v720 = vpop.xlane.xlu0 %719
    %v721 = vsel %vm20, %v679, -inf
    %722 = vmax.xlane.f32.xlu0 %v721
    %v723 = vpop.xlane.xlu0 %722
    %v724 = vsel %vm20, %v680, -inf
    %725 = vmax.xlane.f32.xlu0 %v724
    %v726 = vpop.xlane.xlu0 %725
    %v727 = vsel %vm20, %v681, -inf
    %728 = vmax.xlane.f32.xlu0 %v727
    %v729 = vpop.xlane.xlu0 %728
    %v730 = vsel %vm20, %v682, -inf
    %731 = vmax.xlane.f32.xlu0 %v730
    %v732 = vpop.xlane.xlu0 %731
    %v733 = vsel %vm20, %v683, -inf
    %734 = vmax.xlane.f32.xlu0 %v733
    %v735 = vpop.xlane.xlu0 %734
    %v736 = vsel %vm20, %v684, -inf
    %737 = vmax.xlane.f32.xlu0 %v736
    %v738 = vpop.xlane.xlu0 %737
    %v739 = vsel %vm20, %v685, -inf
    %740 = vmax.xlane.f32.xlu0 %v739
    %v741 = vpop.xlane.xlu0 %740
    %v742 = vsel %vm20, %v686, -inf
    %743 = vmax.xlane.f32.xlu0 %v742
    %v744 = vpop.xlane.xlu0 %743
    %v745 = vsel %vm20, %v687, -inf
    %746 = vmax.xlane.f32.xlu0 %v745
    %v747 = vpop.xlane.xlu0 %746
    %v748 = vsel %vm20, %v688, -inf
    %749 = vmax.xlane.f32.xlu0 %v748
    %v750 = vpop.xlane.xlu0 %749
    %v751 = vsel %vm20, %v689, -inf
    %752 = vmax.xlane.f32.xlu0 %v751
    %v753 = vpop.xlane.xlu0 %752
    %v754 = vsel %vm20, %v690, -inf
    %755 = vmax.xlane.f32.xlu0 %v754
    %v756 = vpop.xlane.xlu0 %755
    %v757 = vsel %vm20, %v691, -inf
    %758 = vmax.xlane.f32.xlu0 %v757
    %v759 = vpop.xlane.xlu0 %758
    %v760 = vsel %vm20, %v692, -inf
    %761 = vmax.xlane.f32.xlu0 %v760
    %v762 = vpop.xlane.xlu0 %761
    %v763 = vsel %vm20, %v693, -inf
    %764 = vmax.xlane.f32.xlu0 %v763
    %v765 = vpop.xlane.xlu0 %764
    %v766 = vsel %vm20, %v694, -inf
    %767 = vmax.xlane.f32.xlu0 %v766
    %v768 = vpop.xlane.xlu0 %767
    %v769 = vsel %vm20, %v695, -inf
    %770 = vmax.xlane.f32.xlu0 %v769
    %v771 = vpop.xlane.xlu0 %770
    %v772 = vsel %vm20, %v696, -inf
    %773 = vmax.xlane.f32.xlu0 %v772
    %v774 = vpop.xlane.xlu0 %773
    %v775 = vsel %vm20, %v697, -inf
    %776 = vmax.xlane.f32.xlu0 %v775
    %v777 = vpop.xlane.xlu0 %776
    %v778 = vsel %vm20, %v698, -inf
    %779 = vmax.xlane.f32.xlu0 %v778
    %v780 = vpop.xlane.xlu0 %779
    %v781 = vsel %vm20, %v699, -inf
    %782 = vmax.xlane.f32.xlu0 %v781
    %v783 = vpop.xlane.xlu0 %782
    %v784 = vsel %vm20, %v700, -inf
    %785 = vmax.xlane.f32.xlu0 %v784
    %v786 = vpop.xlane.xlu0 %785
    %v787 = vsel %vm20, %v701, -inf
    %788 = vmax.xlane.f32.xlu0 %v787
    %v789 = vpop.xlane.xlu0 %788
    %v790 = vsel %vm20, %v702, -inf
    %791 = vmax.xlane.f32.xlu0 %v790
    %v792 = vpop.xlane.xlu0 %791
    %v793 = vsel %vm20, %v703, -inf
    %794 = vmax.xlane.f32.xlu0 %v793
    %v795 = vpop.xlane.xlu0 %794
    %v796 = vsel %vm20, %v704, -inf
    %797 = vmax.xlane.f32.xlu0 %v796
    %v798 = vpop.xlane.xlu0 %797
    %v799 = vsel %vm20, %v705, -inf
    %800 = vmax.xlane.f32.xlu0 %v799
    %v801 = vpop.xlane.xlu0 %800
    %v834 = vlaneseq
    %v835 = vshrl.u32 %v834, 7
    %v836 = vsub.s32 %v333, %v835
    %v837 = vrot.slane %v708, %v836
    %v838 = vlaneseq
    %v839 = vshrl.u32 %v838, 7
    %v840 = vsub.s32 %v338, %v839
    %v841 = vrot.slane %v711, %v840
    %v842 = vsel %vm343, %v841, %v837
    %v843 = vadd.s32 %v333, 4294967280
    %v844 = vlaneseq
    %v845 = vshrl.u32 %v844, 7
    %v846 = vsub.s32 %v843, %v845
    %v847 = vrot.slane %v714, %v846
    %vm848 = vcmask 195712
    %v849 = vsel %vm848, %v847, %v842
    %v850 = vadd.s32 %v333, 4294967272
    %v851 = vlaneseq
    %v852 = vshrl.u32 %v851, 7
    %v853 = vsub.s32 %v850, %v852
    %v854 = vrot.slane %v717, %v853
    %vm855 = vcmask 261312
    %v856 = vsel %vm855, %v854, %v849
    %v857 = vlaneseq
    %v858 = vshrl.u32 %v857, 7
    %v859 = vsub.s32 %v333, %v858
    %v860 = vrot.slane %v720, %v859
    %v861 = vlaneseq
    %v862 = vshrl.u32 %v861, 7
    %v863 = vsub.s32 %v338, %v862
    %v864 = vrot.slane %v723, %v863
    %v865 = vsel %vm343, %v864, %v860
    %v866 = vlaneseq
    %v867 = vshrl.u32 %v866, 7
    %v868 = vsub.s32 %v843, %v867
    %v869 = vrot.slane %v726, %v868
    %v870 = vsel %vm848, %v869, %v865
    %v871 = vlaneseq
    %v872 = vshrl.u32 %v871, 7
    %v873 = vsub.s32 %v850, %v872
    %v874 = vrot.slane %v729, %v873
    %v875 = vsel %vm855, %v874, %v870
    %v876 = vlaneseq
    %v877 = vshrl.u32 %v876, 7
    %v878 = vsub.s32 %v333, %v877
    %v879 = vrot.slane %v732, %v878
    %v880 = vlaneseq
    %v881 = vshrl.u32 %v880, 7
    %v882 = vsub.s32 %v338, %v881
    %v883 = vrot.slane %v735, %v882
    %v884 = vsel %vm343, %v883, %v879
    %v885 = vlaneseq
    %v886 = vshrl.u32 %v885, 7
    %v887 = vsub.s32 %v843, %v886
    %v888 = vrot.slane %v738, %v887
    %v889 = vsel %vm848, %v888, %v884
    %v890 = vlaneseq
    %v891 = vshrl.u32 %v890, 7
    %v892 = vsub.s32 %v850, %v891
    %v893 = vrot.slane %v741, %v892
    %v894 = vsel %vm855, %v893, %v889
    %v895 = vlaneseq
    %v896 = vshrl.u32 %v895, 7
    %v897 = vsub.s32 %v333, %v896
    %v898 = vrot.slane %v744, %v897
    %v899 = vlaneseq
    %v900 = vshrl.u32 %v899, 7
    %v901 = vsub.s32 %v338, %v900
    %v902 = vrot.slane %v747, %v901
    %v903 = vsel %vm343, %v902, %v898
    %v904 = vlaneseq
    %v905 = vshrl.u32 %v904, 7
    %v906 = vsub.s32 %v843, %v905
    %v907 = vrot.slane %v750, %v906
    %v908 = vsel %vm848, %v907, %v903
    %v909 = vlaneseq
    %v910 = vshrl.u32 %v909, 7
    %v911 = vsub.s32 %v850, %v910
    %v912 = vrot.slane %v753, %v911
    %v913 = vsel %vm855, %v912, %v908
    %v914 = vlaneseq
    %v915 = vshrl.u32 %v914, 7
    %v916 = vsub.s32 %v333, %v915
    %v917 = vrot.slane %v756, %v916
    %v918 = vlaneseq
    %v919 = vshrl.u32 %v918, 7
    %v920 = vsub.s32 %v338, %v919
    %v921 = vrot.slane %v759, %v920
    %v922 = vsel %vm343, %v921, %v917
    %v923 = vlaneseq
    %v924 = vshrl.u32 %v923, 7
    %v925 = vsub.s32 %v843, %v924
    %v926 = vrot.slane %v762, %v925
    %v927 = vsel %vm848, %v926, %v922
    %v928 = vlaneseq
    %v929 = vshrl.u32 %v928, 7
    %v930 = vsub.s32 %v850, %v929
    %v931 = vrot.slane %v765, %v930
    %v932 = vsel %vm855, %v931, %v927
    %v933 = vlaneseq
    %v934 = vshrl.u32 %v933, 7
    %v935 = vsub.s32 %v333, %v934
    %v936 = vrot.slane %v768, %v935
    %v937 = vlaneseq
    %v938 = vshrl.u32 %v937, 7
    %v939 = vsub.s32 %v338, %v938
    %v940 = vrot.slane %v771, %v939
    %v941 = vsel %vm343, %v940, %v936
    %v942 = vlaneseq
    %v943 = vshrl.u32 %v942, 7
    %v944 = vsub.s32 %v843, %v943
    %v945 = vrot.slane %v774, %v944
    %v946 = vsel %vm848, %v945, %v941
    %v947 = vlaneseq
    %v948 = vshrl.u32 %v947, 7
    %v949 = vsub.s32 %v850, %v948
    %v950 = vrot.slane %v777, %v949
    %v951 = vsel %vm855, %v950, %v946
    %v952 = vlaneseq
    %v953 = vshrl.u32 %v952, 7
    %v954 = vsub.s32 %v333, %v953
    %v955 = vrot.slane %v780, %v954
    %v956 = vlaneseq
    %v957 = vshrl.u32 %v956, 7
    %v958 = vsub.s32 %v338, %v957
    %v959 = vrot.slane %v783, %v958
    %v960 = vsel %vm343, %v959, %v955
    %v961 = vlaneseq
    %v962 = vshrl.u32 %v961, 7
    %v963 = vsub.s32 %v843, %v962
    %v964 = vrot.slane %v786, %v963
    %v965 = vsel %vm848, %v964, %v960
    %v966 = vlaneseq
    %v967 = vshrl.u32 %v966, 7
    %v968 = vsub.s32 %v850, %v967
    %v969 = vrot.slane %v789, %v968
    %v970 = vsel %vm855, %v969, %v965
    %v971 = vlaneseq
    %v972 = vshrl.u32 %v971, 7
    %v973 = vsub.s32 %v333, %v972
    %v974 = vrot.slane %v792, %v973
    %v975 = vlaneseq
    %v976 = vshrl.u32 %v975, 7
    %v977 = vsub.s32 %v338, %v976
    %v978 = vrot.slane %v795, %v977
    %v979 = vsel %vm343, %v978, %v974
    %v980 = vlaneseq
    %v981 = vshrl.u32 %v980, 7
    %v982 = vsub.s32 %v843, %v981
    %v983 = vrot.slane %v798, %v982
    %v984 = vsel %vm848, %v983, %v979
    %v985 = vlaneseq
    %v986 = vshrl.u32 %v985, 7
    %v987 = vsub.s32 %v850, %v986
    %v988 = vrot.slane %v801, %v987
    %v989 = vsel %vm855, %v988, %v984
    %v990 = vsel %vm408, %v875, %v856
    %v991 = vsel %vm410, %v894, %v990
    %v992 = vsel %vm412, %v913, %v991
    %v993 = vsel %vm414, %v932, %v992
    %v994 = vsel %vm416, %v951, %v993
    %v995 = vsel %vm418, %v970, %v994
    %v996 = vsel %vm420, %v989, %v995
    %v998 = vsel %vm315, %v996, 0.0
    %v1000 = vsel %vm515, %v998, 0
    %1002 = vmatprep.subr.mxu0 0.0
    %1003 = vmatpush1.msra.mxu0 0.0
    %1004 = vmatprep.subr.mxu0 0.0
    %1005 = vmatpush1.msra.mxu0 0.0
    %1006 = vmatprep.subr.mxu0 0.0
    %1007 = vmatpush1.msra.mxu0 0.0
    %1008 = vmatprep.subr.mxu0 0.0
    %1009 = vmatpush1.msra.mxu0 0.0
    %1010 = vmatprep.subr.mxu0 0.0
    %1011 = vmatpush1.msra.mxu0 0.0
    %1012 = vmatprep.subr.mxu0 0.0
    %1013 = vmatpush1.msra.mxu0 0.0
    %1014 = vmatprep.subr.mxu0 0.0
    %1015 = vmatpush1.msra.mxu0 0.0
    %1016 = vmatprep.subr.mxu0 0.0
    %1017 = vmatpush1.msra.mxu0 0.0
    %1018 = vmatprep.subr.mxu0 0.0
    %1019 = vmatpush1.msra.mxu0 0.0
    %1020 = vmatprep.subr.mxu0 0.0
    %1021 = vmatpush1.msra.mxu0 0.0
    %1022 = vmatprep.subr.mxu0 0.0
    %1023 = vmatpush1.msra.mxu0 0.0
    %1024 = vmatprep.subr.mxu0 0.0
    %1025 = vmatpush1.msra.mxu0 0.0
    %1026 = vmatprep.subr.mxu0 0.0
    %1027 = vmatpush1.msra.mxu0 %v560
    %1028 = vmatprep.subr.mxu0 0.0
    %1029 = vmatpush1.msra.mxu0 %v559
    %1030 = vmatprep.subr.mxu0 0.0
    %1031 = vmatpush1.msra.mxu0 %v558
    %1032 = vmatprep.subr.mxu0 0.0
    %1033 = vmatpush1.msra.mxu0 %v557
    %1034 = vmatprep.subr.mxu0 0.0
    %1035 = vmatpush2.msra.mxu0 0.0
    %1036 = vmatprep.subr.mxu0 0.0
    %1037 = vmatpush2.msra.mxu0 0.0
    %1038 = vmatprep.subr.mxu0 0.0
    %1039 = vmatpush2.msra.mxu0 0.0
    %1040 = vmatprep.subr.mxu0 0.0
    %1041 = vmatpush2.msra.mxu0 0.0
    %1042 = vmatprep.subr.mxu0 0.0
    %1043 = vmatpush2.msra.mxu0 0.0
    %1044 = vmatprep.subr.mxu0 0.0
    %1045 = vmatpush2.msra.mxu0 0.0
    %1046 = vmatprep.subr.mxu0 0.0
    %1047 = vmatpush2.msra.mxu0 0.0
    %1048 = vmatprep.subr.mxu0 0.0
    %1049 = vmatpush2.msra.mxu0 0.0
    %1050 = vmatprep.subr.mxu0 0.0
    %1051 = vmatpush2.msra.mxu0 0.0
    %1052 = vmatprep.subr.mxu0 0.0
    %1053 = vmatpush2.msra.mxu0 0.0
    %1054 = vmatprep.subr.mxu0 0.0
    %1055 = vmatpush2.msra.mxu0 0.0
    %1056 = vmatprep.subr.mxu0 0.0
    %1057 = vmatpush2.msra.mxu0 0.0
    %1058 = vmatprep.subr.mxu0 0.0
    %1059 = vmatpush2.msra.mxu0 0.0
    %1060 = vmatprep.subr.mxu0 0.0
    %1061 = vmatpush2.msra.mxu0 0.0
    %1062 = vmatprep.subr.mxu0 0.0
    %1063 = vmatpush2.msra.mxu0 0.0
    %1064 = vmatprep.subr.mxu0 0.0
    %1065 = vmatpush2.msra.mxu0 0.0
    %1066 = vmatprep.mubr.f32.mxu0 0.0
    %1067 = vmatmul.mubr.f32.gmra.mxu0 %v1000
    %v1068 = vpop.f32.mrf.mxu0
    %v1069 = vadd.f32 0.0, %v1068
    %v1070 = vpop.f32.mrf.mxu0
    %1071 = vdwg.mxu0
    %1073 = vrot.lane.b32.xlu0 %v1069, 32
    %v1074 = vpop.permute.xlu0 %1073
    %v1076 = vadd.f32 %v633, %v1074
    %v1077 = vlaneseq
    %v1078 = vshrl.u32 %v1077, 7
    %v1079 = vsub.s32 5, %v1078
    %v1080 = vrot.slane %v25, %v1079
    %1082 = vrot.lane.b32.xlu0 %v1080, 32
    %v1083 = vpop.permute.xlu0 %1082
    %v1085 = vadd.f32 %v1076, %v1083
    %1087 = vrot.lane.b32.xlu0 %v1085, 96
    %v1088 = vpop.permute.xlu0 %1087
    %v1090 = vsel %vm515, %v1088, 0.0
    %1091 = vadd.xlane.f32.xlu0 %v1090
    %v1092 = vpop.xlane.xlu0 %1091
    %v1093 = vmul.f32 %v1092, %v519
    %v1094 = vsub.f32 %v1085, %v1093
    %v1095 = vmul.f32 %v1094, %v1094
    %1097 = vrot.lane.b32.xlu0 %v1095, 96
    %v1098 = vpop.permute.xlu0 %1097
    %v1100 = vsel %vm515, %v1098, 0.0
    %1101 = vadd.xlane.f32.xlu0 %v1100
    %v1102 = vpop.xlane.xlu0 %1101
    %v1103 = vmul.f32 %v1102, %v519
    %v1104 = vadd.f32 %v1103, 1e-05
    %v1105 = vrsqrt.pop %v1104
    %v1106 = vmul.f32 %v1094, %v1105
    %v1107 = vlaneseq
    %v1108 = vshrl.u32 %v1107, 7
    %v1109 = vsub.s32 6, %v1108
    %v1110 = vrot.slane %v25, %v1109
    %1112 = vrot.lane.b32.xlu0 %v1110, 32
    %v1113 = vpop.permute.xlu0 %1112
    %v1115 = vmul.f32 %v1106, %v1113
    %v1116 = vlaneseq
    %v1117 = vshrl.u32 %v1116, 7
    %v1118 = vsub.s32 7, %v1117
    %v1119 = vrot.slane %v25, %v1118
    %1121 = vrot.lane.b32.xlu0 %v1119, 32
    %v1122 = vpop.permute.xlu0 %1121
    %v1124 = vadd.f32 %v1115, %v1122
    %v1125 = vmax.f32 %v1124, 0.0
    %v1126 = vld [vmem:[%s2 + $0x80] sm:$0xff]
    %v1127 = vld [vmem:[%s2 + $0x88] sm:$0xff]
    %v1128 = vld [vmem:[%s2 + $0x90] sm:$0xff]
    %v1129 = vld [vmem:[%s2 + $0x98] sm:$0xff]
    %vm1130 = vcmask 523520
    %v1131 = vsel %vm1130, %v1125, -inf
    %v1132 = vrot.slane %v1131, 4
    %v1133 = vmax.f32 %v1131, %v1132
    %v1134 = vrot.slane %v1133, 2
    %v1135 = vmax.f32 %v1133, %v1134
    %v1136 = vrot.slane %v1135, 1
    %v1137 = vmax.f32 %v1135, %v1136
    %1139 = vrot.lane.b32.xlu0 %v1137, 96
    %v1140 = vpop.permute.xlu0 %1139
    %v1141 = vsel %vm515, %v1140, 0
    %1143 = vmatprep.subr.mxu0 0.0
    %1144 = vmatpush1.msra.mxu0 0.0
    %1145 = vmatprep.subr.mxu0 0.0
    %1146 = vmatpush1.msra.mxu0 0.0
    %1147 = vmatprep.subr.mxu0 0.0
    %1148 = vmatpush1.msra.mxu0 0.0
    %1149 = vmatprep.subr.mxu0 0.0
    %1150 = vmatpush1.msra.mxu0 0.0
    %1151 = vmatprep.subr.mxu0 0.0
    %1152 = vmatpush1.msra.mxu0 0.0
    %1153 = vmatprep.subr.mxu0 0.0
    %1154 = vmatpush1.msra.mxu0 0.0
    %1155 = vmatprep.subr.mxu0 0.0
    %1156 = vmatpush1.msra.mxu0 0.0
    %1157 = vmatprep.subr.mxu0 0.0
    %1158 = vmatpush1.msra.mxu0 0.0
    %1159 = vmatprep.subr.mxu0 0.0
    %1160 = vmatpush1.msra.mxu0 0.0
    %1161 = vmatprep.subr.mxu0 0.0
    %1162 = vmatpush1.msra.mxu0 0.0
    %1163 = vmatprep.subr.mxu0 0.0
    %1164 = vmatpush1.msra.mxu0 0.0
    %1165 = vmatprep.subr.mxu0 0.0
    %1166 = vmatpush1.msra.mxu0 0.0
    %1167 = vmatprep.subr.mxu0 0.0
    %1168 = vmatpush1.msra.mxu0 %v1129
    %1169 = vmatprep.subr.mxu0 0.0
    %1170 = vmatpush1.msra.mxu0 %v1128
    %1171 = vmatprep.subr.mxu0 0.0
    %1172 = vmatpush1.msra.mxu0 %v1127
    %1173 = vmatprep.subr.mxu0 0.0
    %1174 = vmatpush1.msra.mxu0 %v1126
    %1175 = vmatprep.subr.mxu0 0.0
    %1176 = vmatpush2.msra.mxu0 0.0
    %1177 = vmatprep.subr.mxu0 0.0
    %1178 = vmatpush2.msra.mxu0 0.0
    %1179 = vmatprep.subr.mxu0 0.0
    %1180 = vmatpush2.msra.mxu0 0.0
    %1181 = vmatprep.subr.mxu0 0.0
    %1182 = vmatpush2.msra.mxu0 0.0
    %1183 = vmatprep.subr.mxu0 0.0
    %1184 = vmatpush2.msra.mxu0 0.0
    %1185 = vmatprep.subr.mxu0 0.0
    %1186 = vmatpush2.msra.mxu0 0.0
    %1187 = vmatprep.subr.mxu0 0.0
    %1188 = vmatpush2.msra.mxu0 0.0
    %1189 = vmatprep.subr.mxu0 0.0
    %1190 = vmatpush2.msra.mxu0 0.0
    %1191 = vmatprep.subr.mxu0 0.0
    %1192 = vmatpush2.msra.mxu0 0.0
    %1193 = vmatprep.subr.mxu0 0.0
    %1194 = vmatpush2.msra.mxu0 0.0
    %1195 = vmatprep.subr.mxu0 0.0
    %1196 = vmatpush2.msra.mxu0 0.0
    %1197 = vmatprep.subr.mxu0 0.0
    %1198 = vmatpush2.msra.mxu0 0.0
    %1199 = vmatprep.subr.mxu0 0.0
    %1200 = vmatpush2.msra.mxu0 0.0
    %1201 = vmatprep.subr.mxu0 0.0
    %1202 = vmatpush2.msra.mxu0 0.0
    %1203 = vmatprep.subr.mxu0 0.0
    %1204 = vmatpush2.msra.mxu0 0.0
    %1205 = vmatprep.subr.mxu0 0.0
    %1206 = vmatpush2.msra.mxu0 0.0
    %1207 = vmatprep.mubr.f32.mxu0 0.0
    %1208 = vmatmul.mubr.f32.gmra.mxu0 %v1141
    %v1209 = vpop.f32.mrf.mxu0
    %v1210 = vadd.f32 %v26, %v1209
    %v1211 = vpop.f32.mrf.mxu0
    %1212 = vdwg.mxu0
    %1213 = vst [vmem:[#allocation2] sm:$0x1] %v1210
    // Predicated region
    $region18: #{gnn_forward.1} parent=1 // pred_check
      _
    $region19: #{gnn_forward.1} parent=1 // pred_check_branch
      %1215 = sbr.rel (0) target = $region21
    $region20: #{gnn_forward.1} parent=1 // pred_region
      %s1217 = ssub.s32 16, 16
      %1218 = vsyncadd [#allocation3], %s1217
      %s1220 = sshll.u32 [#allocation2], 4
      %s1221 = int_to_ptr.vmem [resolvable:$true] %s1220
      %1223 = dma.vmem_to_hbm [thread:$0]  %s1221, 16, %s4, [#allocation3]
    $region21: #{gnn_forward.1} parent=1 // pred_fallthru
      _
    // Predicated region
    $region22: #{gnn_forward.1} parent=1 // pred_check
      _
    $region23: #{gnn_forward.1} parent=1 // pred_check_branch
      %1225 = sbr.rel (0) target = $region25
    $region24: #{gnn_forward.1} parent=1 // pred_region
      %1226 = dma.done [#allocation3], 16
    $region25: #{gnn_forward.1} parent=1 // pred_fallthru
      _
    %1227 = vsyncpa [#allocation3], 1

</llo_original>
